<compile_context>
chip_gen: v6e
topology: v6e:2x2x1
jax: 0.10.0
libtpu: 0.0.40
codegen_flags: <defaults>
</compile_context>

<pallas_src>
import jax
import jax.numpy as jnp
from jax.experimental import pallas as pl
from jax.experimental.pallas import tpu as pltpu


def _round_up(v: int, m: int) -> int:
    return ((v + m - 1) // m) * m


def _round_down(v: int, m: int) -> int:
    return (v // m) * m


def _tile_bytes(r: int, c: int, dtype) -> int:
    """VMEM footprint of an (r, c) block after (8, 128) tile padding."""
    return _round_up(max(r, 1), 8) * _round_up(max(c, 1), 128) * jnp.dtype(dtype).itemsize


def _vmem_budget_bytes() -> int:
    """Per-chip VMEM budget: never request the full physical VMEM."""
    phys = 64 << 20  # conservative default = v7x per-TensorCore VMEM
    try:
        info_fn = getattr(pltpu, "get_tpu_info", None)
        if info_fn is not None:
            phys = int(getattr(info_fn(), "vmem_capacity_bytes", phys))
    except Exception:
        pass
    # Leave headroom for compiler-internal scratch / semaphores:
    # v5e/v6e (128 MiB) -> 96 MiB, v7x (64 MiB) -> 48 MiB.
    return int(min(phys * 3 // 4, 96 << 20))


# ---------------------------------------------------------------------------
# Kernels
# ---------------------------------------------------------------------------
def _residual_linear_kernel(x_ref, w_ref, b_ref, o_ref):
    """out = x + (x @ W + b) for one (tm, H) row tile.

    W / bias have constant block indices -> fetched once, VMEM-resident across
    the whole row grid. MXU runs bf16 x bf16 with f32 accumulation; residual
    and bias are added in f32 and only the final store casts to the out dtype.
    """
    x = x_ref[...]                                            # (tm, H)
    delta = jnp.dot(x.astype(w_ref.dtype), w_ref[...],
                    preferred_element_type=jnp.float32)       # MXU, f32 acc
    o_ref[...] = (x.astype(jnp.float32) + delta + b_ref[...]).astype(o_ref.dtype)


def _residual_linear_ktiled_kernel(xk_ref, xfull_ref, w_ref, b_ref, o_ref, acc_ref):
    """Large-H variant: stream (tk, H) weight panels, f32 VMEM accumulator.

    Grid is (row tiles, K tiles) with K innermost and "arbitrary". The output
    block index is constant across K, so o_ref is resident; we seed the
    accumulator with the f32 residual + bias at k == 0 and store at k == last.
    """
    k = pl.program_id(1)

    @pl.when(k == 0)
    def _init():
        # Residual kept in f32 (matches `inputs + delta` semantics).
        acc_ref[...] = xfull_ref[...].astype(jnp.float32) + b_ref[...]

    acc_ref[...] += jnp.dot(xk_ref[...].astype(w_ref.dtype), w_ref[...],
                            preferred_element_type=jnp.float32)

    @pl.when(k == pl.num_programs(1) - 1)
    def _finalize():
        o_ref[...] = acc_ref[...].astype(o_ref.dtype)


# ---------------------------------------------------------------------------
# Parameter prep (hoisted out of the per-call forward)
# ---------------------------------------------------------------------------
def prepare_params(weight, bias, compute_dtype=jnp.bfloat16):
    """One-time prep: transpose the PyTorch nn.Linear weight (out, in) -> (in, out)
    so the kernel's x @ W_prep equals x @ W^T, and cast to the MXU compute dtype
    once instead of paying a cast + transpose HBM pass on every forward call."""
    out_f, in_f = weight.shape
    assert out_f == in_f, "residual wrapper needs in_features == out_features"
    w_prep = jnp.asarray(weight.T, dtype=compute_dtype)
    b_prep = jnp.asarray(bias, dtype=jnp.float32).reshape(1, out_f)
    return w_prep, b_prep


# ---------------------------------------------------------------------------
# Forward
# ---------------------------------------------------------------------------
def residual_wrapper_forward(x, w_prep, b_prep, *, k_tile_override=None):
    """ResidualWrapper4RTransformer.forward with a Linear(H->H) inner model.

    x: (B, S, H); w_prep: (H, H) already transposed/cast (see prepare_params);
    b_prep: (1, H) f32.  Returns x + (x @ w_prep + b_prep).
    """
    B, S, H = x.shape
    rows = B * S
    x2d = x.reshape(rows, H)                       # metadata-only reshape
    itemsize = jnp.dtype(x.dtype).itemsize
    w_itemsize = jnp.dtype(w_prep.dtype).itemsize

    budget = _vmem_budget_bytes()
    headroom = 4 << 20

    # Row tile: multiple of 128 (or the full row count when small), sized for
    # ~2 MiB x-tiles so HBM<->VMEM pipelining runs near roofline and the
    # ~0.35us per-grid-step overhead stays amortized.
    def pick_tm() -> int:
        if rows <= 128:
            return rows                            # full-dim block is legal
        tm_ = max(128, _round_down((2 << 20) // max(1, H * itemsize), 128))
        return min(tm_, 8192, _round_down(rows, 128))

    tm = pick_tm()

    def resident_need(tm_: int) -> int:
        return (2 * _tile_bytes(H, H, w_prep.dtype)        # W (double-buffered)
                + 2 * _tile_bytes(1, H, jnp.float32)       # bias
                + 4 * _tile_bytes(tm_, H, x.dtype))        # x + out, double-buffered

    use_ktiled = (k_tile_override is not None) or (
        resident_need(tm) + headroom > budget and H % 128 == 0)

    # ---------------- resident-weight path (small / medium H) ----------------
    if not use_ktiled:
        while resident_need(tm) + headroom > budget and tm > 128:
            tm = max(128, _round_down(tm // 2, 128))

        grid = (pl.cdiv(rows, tm),)
        cost = pl.CostEstimate(
            flops=2 * rows * H * H, transcendentals=0,
            bytes_accessed=2 * rows * H * itemsize + H * H * w_itemsize + H * 4)

        out2d = pl.pallas_call(
            _residual_linear_kernel,
            out_shape=jax.ShapeDtypeStruct((rows, H), x.dtype),
            grid_spec=pltpu.PrefetchScalarGridSpec(
                num_scalar_prefetch=0,
                grid=grid,
                in_specs=[
                    pl.BlockSpec((tm, H), lambda i: (i, 0)),  # x row tile (ragged last block masked)
                    pl.BlockSpec((H, H), lambda i: (0, 0)),   # W: constant block -> fetched once
                    pl.BlockSpec((1, H), lambda i: (0, 0)),   # bias: constant block
                ],
                out_specs=pl.BlockSpec((tm, H), lambda i: (i, 0)),
            ),
            compiler_params=pltpu.CompilerParams(
                dimension_semantics=("parallel",),            # independent row tiles (v7x megacore)
                vmem_limit_bytes=int(min(budget, max(resident_need(tm) + headroom, 16 << 20))),
            ),
            cost_estimate=cost,
        )(x2d, w_prep, b_prep)
        return out2d.reshape(B, S, H)

    # ---------------- K-tiled path (large H: stream the weight) --------------
    if k_tile_override is not None:
        tk = int(k_tile_override)
    else:
        tk = next(t for t in (1024, 512, 256, 128) if H % t == 0)
    assert H % tk == 0 and tk % 128 == 0, "K tiling requires hidden % 128 == 0"

    def ktiled_need(tm_: int) -> int:
        return (2 * _tile_bytes(tm_, tk, x.dtype)          # x K-chunks (matmul LHS)
                + 2 * _tile_bytes(tm_, H, x.dtype)          # x full row tile (residual)
                + 2 * _tile_bytes(tk, H, w_prep.dtype)      # streamed weight panel
                + 2 * _tile_bytes(1, H, jnp.float32)        # bias
                + 2 * _tile_bytes(tm_, H, x.dtype)          # out
                + _tile_bytes(tm_, H, jnp.float32))         # acc scratch

    while ktiled_need(tm) + headroom > budget and tm > 128:
        tm = max(128, _round_down(tm // 2, 128))

    n_row_tiles = pl.cdiv(rows, tm)
    grid = (n_row_tiles, H // tk)
    cost = pl.CostEstimate(
        flops=2 * rows * H * H, transcendentals=0,
        bytes_accessed=3 * rows * H * itemsize + n_row_tiles * H * H * w_itemsize + H * 4)

    out2d = pl.pallas_call(
        _residual_linear_ktiled_kernel,
        out_shape=jax.ShapeDtypeStruct((rows, H), x.dtype),
        grid_spec=pltpu.PrefetchScalarGridSpec(
            num_scalar_prefetch=0,
            grid=grid,
            in_specs=[
                pl.BlockSpec((tm, tk), lambda i, k: (i, k)),  # x K-chunk for the MXU
                pl.BlockSpec((tm, H), lambda i, k: (i, 0)),   # x full tile (constant over k -> fetched once per row tile)
                pl.BlockSpec((tk, H), lambda i, k: (k, 0)),   # streamed weight panel
                pl.BlockSpec((1, H), lambda i, k: (0, 0)),    # bias
            ],
            out_specs=pl.BlockSpec((tm, H), lambda i, k: (i, 0)),
            scratch_shapes=[pltpu.VMEM((tm, H), jnp.float32)],
        ),
        compiler_params=pltpu.CompilerParams(
            dimension_semantics=("parallel", "arbitrary"),    # rows parallel, K is a reduction
            vmem_limit_bytes=int(min(budget, max(ktiled_need(tm) + headroom, 16 << 20))),
        ),
        cost_estimate=cost,
    )(x2d, x2d, w_prep, b_prep)
    return out2d.reshape(B, S, H)


# ---------------------------------------------------------------------------
if __name__ == "__main__":
    key = jax.random.PRNGKey(0)
    kx, kw, kb, kx2, kw2, kb2 = jax.random.split(key, 6)

    # --- Test 1: small shapes consistent with a sequence model (resident-W path)
    B, S, H = 2, 8, 32
    x = jax.random.normal(kx, (B, S, H), dtype=jnp.float32)
    # Deterministic synthetic parameters in PyTorch nn.Linear layout (out, in).
    w = jax.random.normal(kw, (H, H), dtype=jnp.float32) * (1.0 / jnp.sqrt(H))
    b = jax.random.normal(kb, (H,), dtype=jnp.float32) * 0.01

    w_prep, b_prep = prepare_params(w, b)          # one-time (hoisted) weight prep
    fwd = jax.jit(residual_wrapper_forward)
    out = jax.block_until_ready(fwd(x, w_prep, b_prep))
    assert out.shape == (B, S, H)

    # Reference with matching MXU precision (bf16 operands, f32 accumulation),
    # using the PyTorch convention y = x @ W^T + b.
    delta_ref = jnp.einsum("bsh,oh->bso",
                           x.astype(jnp.bfloat16), w.astype(jnp.bfloat16),
                           preferred_element_type=jnp.float32)
    ref = x + delta_ref + b
    assert jnp.allclose(out, ref, atol=1e-4, rtol=1e-4), "mismatch vs bf16 reference"

    ref_f32 = x + (jnp.einsum("bsh,oh->bso", x, w) + b)
    assert jnp.allclose(out, ref_f32, atol=5e-2, rtol=5e-2), "mismatch vs f32 reference"

    # --- Test 2: exercise the K-tiled (streamed-weight) path used for large H
    H2 = 256
    x2 = jax.random.normal(kx2, (B, S, H2), dtype=jnp.float32)
    w2 = jax.random.normal(kw2, (H2, H2), dtype=jnp.float32) * (1.0 / jnp.sqrt(H2))
    b2 = jax.random.normal(kb2, (H2,), dtype=jnp.float32) * 0.01
    w2_prep, b2_prep = prepare_params(w2, b2)
    out2 = jax.block_until_ready(
        residual_wrapper_forward(x2, w2_prep, b2_prep, k_tile_override=128))
    delta2 = jnp.einsum("bsh,oh->bso",
                        x2.astype(jnp.bfloat16), w2.astype(jnp.bfloat16),
                        preferred_element_type=jnp.float32)
    assert jnp.allclose(out2, x2 + delta2 + b2, atol=1e-4, rtol=1e-4), \
        "mismatch vs bf16 reference (K-tiled path)"

    print("KERNEL_OK")
</pallas_src>

<mosaic_0001>
module attributes {stable_mosaic.version = 11 : i64} {
  func.func @_residual_linear_kernel(%arg0: i32, %arg1: memref<16x32xf32, #tpu.memory_space<vmem>>, %arg2: memref<32x32xbf16, #tpu.memory_space<vmem>>, %arg3: memref<1x32xf32, #tpu.memory_space<vmem>>, %arg4: memref<16x32xf32, #tpu.memory_space<vmem>>) attributes {dimension_semantics = [#tpu.dimension_semantics<parallel>], iteration_bounds = array<i64: 1>, scalar_prefetch = 0 : i64, scratch_operands = 0 : i64, tpu.core_type = #tpu.core_type<tc>, window_params = [{transform_indices = @transform_0, window_bounds = array<i64: 16, 32>}, {pipeline_mode = #tpu.pipeline_mode<synchronous>, transform_indices = @transform_1, window_bounds = array<i64: 32, 32>}, {pipeline_mode = #tpu.pipeline_mode<synchronous>, transform_indices = @transform_2, window_bounds = array<i64: 1, 32>}, {transform_indices = @transform_3, window_bounds = array<i64: 16, 32>}]} {
    %c0 = arith.constant 0 : index
    %c0_0 = arith.constant 0 : index
    %0 = vector.load %arg1[%c0, %c0_0] : memref<16x32xf32, #tpu.memory_space<vmem>>, vector<16x32xf32>
    %1 = arith.truncf %0 : vector<16x32xf32> to vector<16x32xbf16>
    %c0_1 = arith.constant 0 : index
    %c0_2 = arith.constant 0 : index
    %2 = vector.load %arg2[%c0_1, %c0_2] : memref<32x32xbf16, #tpu.memory_space<vmem>>, vector<32x32xbf16>
    %cst = arith.constant dense<0.000000e+00> : vector<16x32xf32>
    %3 = tpu.matmul %1, %2, %cst {dimension_numbers = #tpu.dot_dimension_numbers<[1], [0], [0], [1], [0, 0, 1, 1], [], []>} : vector<16x32xbf16>, vector<32x32xbf16>, vector<16x32xf32> -> vector<16x32xf32>
    %4 = arith.addf %0, %3 : vector<16x32xf32>
    %c0_3 = arith.constant 0 : index
    %c0_4 = arith.constant 0 : index
    %5 = vector.load %arg3[%c0_3, %c0_4] : memref<1x32xf32, #tpu.memory_space<vmem>>, vector<1x32xf32>
    %6 = vector.broadcast %5 : vector<1x32xf32> to vector<16x32xf32>
    %7 = arith.addf %4, %6 : vector<16x32xf32>
    %c0_5 = arith.constant 0 : index
    %c0_6 = arith.constant 0 : index
    %8 = vector.load %arg4[%c0_5, %c0_6] : memref<16x32xf32, #tpu.memory_space<vmem>>, vector<16x32xf32>
    tpu.vector_store %arg4[%c0_5, %c0_6], %7 {strides = array<i32>} : memref<16x32xf32, #tpu.memory_space<vmem>>, vector<16x32xf32>,
    return
  }
  func.func @transform_0(%arg0: i32) -> (i32, i32) {
    %c0_i32 = arith.constant 0 : i32
    %c0_i32_0 = arith.constant 0 : i32
    return %arg0, %c0_i32 : i32, i32
  }
  func.func @transform_1(%arg0: i32) -> (i32, i32) {
    %c0_i32 = arith.constant 0 : i32
    %c0_i32_0 = arith.constant 0 : i32
    %c0_i32_1 = arith.constant 0 : i32
    return %c0_i32, %c0_i32_0 : i32, i32
  }
  func.func @transform_2(%arg0: i32) -> (i32, i32) {
    %c0_i32 = arith.constant 0 : i32
    %c0_i32_0 = arith.constant 0 : i32
    %c0_i32_1 = arith.constant 0 : i32
    return %c0_i32, %c0_i32_0 : i32, i32
  }
  func.func @transform_3(%arg0: i32) -> (i32, i32) {
    %c0_i32 = arith.constant 0 : i32
    %c0_i32_0 = arith.constant 0 : i32
    return %arg0, %c0_i32 : i32, i32
  }
}

</mosaic_0001>

<llo_original>
// kernel: residual_wrapper_forward.1
$region0: #{residual_wrapper_forward.1}
  #allocation0 [shape = 'u32[]', space=smem, size = 0x4, offset = 0x4, fixed_abs, tag = 'smem constant byte address 0x4 - core index']
  #allocation1 [shape = 'u32[144,128]{1,0:T(1,128)}', space=vmem, size = 0x12000, scoped, tag = 'internal scratch']
  %s0 = inlined_call_operand.hbm [shape: f32[16,32], index: 0, kind: input, shape index: {}]
  %s1 = inlined_call_operand.hbm [shape: bf16[32,32], index: 1, kind: input, shape index: {}]
  %s2 = inlined_call_operand.vmem [shape: f32[1,32], index: 2, kind: input, shape index: {}]
  %s3 = inlined_call_operand.hbm [shape: f32[16,32], index: 3, kind: output, shape index: {}]
  %s4 = sld [smem:[#allocation0]]
  $region30: #{residual_wrapper_forward.1} parent=0
    _
  %s6 = ssub.s32 1, %s4
  %s7 = scalar_select 0, %s6, %s4
  $region1: #{residual_wrapper_forward.1} parent=0
    #allocation2 [shape = 'u8[8192]{0}', space=vmem, size = 0x2000, scoped, tag = 'input window, operand 0, single buffered']
    #allocation3 [shape = 's32[1]{0}', space=sflag, size = 0x4, scoped, tag = 'scoped memory for residual_wrapper_forward.1']
    #allocation4 [shape = 's32[1]{0}', space=sflag, size = 0x4, scoped, tag = 'scoped memory for residual_wrapper_forward.1']
    #allocation5 [shape = 'u8[8192]{0}', space=vmem, size = 0x2000, scoped, tag = 'input window, operand 1, single buffered']
    #allocation6 [shape = 's32[1]{0}', space=sflag, size = 0x4, scoped, tag = 'scoped memory for residual_wrapper_forward.1']
    #allocation7 [shape = 'u8[8192]{0}', space=vmem, size = 0x2000, scoped, tag = 'output window, operand 0, single buffered']
    %8 = vsyncpa [#allocation3], 0
    %9 = vsyncpa [#allocation6], 0
    %10 = vsyncpa [#allocation4], 0
    // Predicated region
    $region2: #{residual_wrapper_forward.1} parent=1 // pred_check
      _
    $region3: #{residual_wrapper_forward.1} parent=1 // pred_check_branch
      %12 = sbr.rel (0) target = $region5
    $region4: #{residual_wrapper_forward.1} parent=1 // pred_region
      %s14 = ssub.s32 256, 256
      %15 = vsyncadd [#allocation3], %s14
      %s16 = sshll.u32 [#allocation2], 4
      %s17 = int_to_ptr.vmem [resolvable:$true] %s16
      %22 = dma.hbm_to_vmem [thread:$0]  %s0, 256, %s17, [#allocation3], 128, 128, 8
    $region5: #{residual_wrapper_forward.1} parent=1 // pred_fallthru
      _
    // Predicated region
    $region6: #{residual_wrapper_forward.1} parent=1 // pred_check
      _
    $region7: #{residual_wrapper_forward.1} parent=1 // pred_check_branch
      %24 = sbr.rel (0) target = $region9
    $region8: #{residual_wrapper_forward.1} parent=1 // pred_region
      %s26 = ssub.s32 256, 256
      %27 = vsyncadd [#allocation6], %s26
      %s28 = sshll.u32 [#allocation5], 4
      %s29 = int_to_ptr.vmem [resolvable:$true] %s28
      %34 = dma.hbm_to_vmem [thread:$0]  %s1, 256, %s29, [#allocation6], 64, 64, 4
    $region9: #{residual_wrapper_forward.1} parent=1 // pred_fallthru
      _
    // Predicated region
    $region10: #{residual_wrapper_forward.1} parent=1 // pred_check
      _
    $region11: #{residual_wrapper_forward.1} parent=1 // pred_check_branch
      %36 = sbr.rel (0) target = $region13
    $region12: #{residual_wrapper_forward.1} parent=1 // pred_region
      _
    $region13: #{residual_wrapper_forward.1} parent=1 // pred_fallthru
      _
    // Predicated region
    $region14: #{residual_wrapper_forward.1} parent=1 // pred_check
      _
    $region15: #{residual_wrapper_forward.1} parent=1 // pred_check_branch
      %38 = sbr.rel (0) target = $region17
    $region16: #{residual_wrapper_forward.1} parent=1 // pred_region
      %39 = dma.done [#allocation3], 256
    $region17: #{residual_wrapper_forward.1} parent=1 // pred_fallthru
      _
    // Predicated region
    $region18: #{residual_wrapper_forward.1} parent=1 // pred_check
      _
    $region19: #{residual_wrapper_forward.1} parent=1 // pred_check_branch
      %41 = sbr.rel (0) target = $region21
    $region20: #{residual_wrapper_forward.1} parent=1 // pred_region
      %42 = dma.done [#allocation6], 256
    $region21: #{residual_wrapper_forward.1} parent=1 // pred_fallthru
      _
    %v44 = vld [vmem:[#allocation2] sm:$0xff]
    %v45 = vld [vmem:[#allocation2 + $0x8] sm:$0xff]
    %v46 = vpack.c.bf16 %v45, %v44
    %v47 = vld [vmem:[#allocation5] sm:$0xf]
    %v48 = vld [vmem:[#allocation5 + $0x4] sm:$0xf]
    %v49 = vld [vmem:[#allocation5 + $0x8] sm:$0xf]
    %v50 = vld [vmem:[#allocation5 + $0xc] sm:$0xf]
    %v55 = vunpack.c.l.b16 %v47
    %v56 = vunpack.c.l.b16 %v48
    %v57 = vunpack.c.l.b16 %v49
    %v58 = vunpack.c.l.b16 %v50
    %v59 = vpack.c.b16 %v56, %v55
    %v60 = vpack.c.b16 %v58, %v57
    %vm63 = vcmask 261120
    %v65 = vsel %vm63, %v46, 0
    %67 = vmatprep.subr.bf16.mxu0 0
    %68 = vmatpush1.bf16.msra.mxu0 0
    %69 = vmatprep.subr.bf16.mxu0 0
    %70 = vmatpush1.bf16.msra.mxu0 0
    %71 = vmatprep.subr.bf16.mxu0 0
    %72 = vmatpush1.bf16.msra.mxu0 0
    %73 = vmatprep.subr.bf16.mxu0 0
    %74 = vmatpush1.bf16.msra.mxu0 0
    %75 = vmatprep.subr.bf16.mxu0 0
    %76 = vmatpush1.bf16.msra.mxu0 0
    %77 = vmatprep.subr.bf16.mxu0 0
    %78 = vmatpush1.bf16.msra.mxu0 0
    %79 = vmatprep.subr.bf16.mxu0 0
    %80 = vmatpush1.bf16.msra.mxu0 %v60
    %81 = vmatprep.subr.bf16.mxu0 0
    %82 = vmatpush1.bf16.msra.mxu0 %v59
    %83 = vmatprep.subr.bf16.mxu0 0
    %84 = vmatpush2.bf16.msra.mxu0 0
    %85 = vmatprep.subr.bf16.mxu0 0
    %86 = vmatpush2.bf16.msra.mxu0 0
    %87 = vmatprep.subr.bf16.mxu0 0
    %88 = vmatpush2.bf16.msra.mxu0 0
    %89 = vmatprep.subr.bf16.mxu0 0
    %90 = vmatpush2.bf16.msra.mxu0 0
    %91 = vmatprep.subr.bf16.mxu0 0
    %92 = vmatpush2.bf16.msra.mxu0 0
    %93 = vmatprep.subr.bf16.mxu0 0
    %94 = vmatpush2.bf16.msra.mxu0 0
    %95 = vmatprep.subr.bf16.mxu0 0
    %96 = vmatpush2.bf16.msra.mxu0 0
    %97 = vmatprep.subr.bf16.mxu0 0
    %98 = vmatpush2.bf16.msra.mxu0 0
    %99 = vmatprep.mubr.bf16.mxu0 0
    %100 = vmatmul.mubr.bf16.gmra.mxu0 %v65
    %v101 = vpop.f32.mrf.mxu0
    %v102 = vadd.f32 0.0, %v101
    %v103 = vpop.f32.mrf.mxu0
    %v104 = vpop.f32.mrf.mxu0
    %v105 = vadd.f32 0.0, %v104
    %v106 = vpop.f32.mrf.mxu0
    %107 = vdwg.mxu0
    %v108 = vadd.f32 %v44, %v102
    %v109 = vadd.f32 %v45, %v105
    %v110 = vld [vmem:[%s2] sm:$0x1]
    %v112 = vlaneseq
    %v113 = vshrl.u32 %v112, 7
    %v114 = vsub.s32 0, %v113
    %v115 = vrot.slane %v110, %v114
    %v117 = vadd.f32 %v108, %v115
    %v118 = vadd.f32 %v109, %v115
    %119 = vst.msk [vmem:[#allocation7] sm:$0xff] %vm63, %v117
    %120 = vst.msk [vmem:[#allocation7 + $0x8] sm:$0xff] %vm63, %v118
    // Predicated region
    $region22: #{residual_wrapper_forward.1} parent=1 // pred_check
      _
    $region23: #{residual_wrapper_forward.1} parent=1 // pred_check_branch
      %122 = sbr.rel (0) target = $region25
    $region24: #{residual_wrapper_forward.1} parent=1 // pred_region
      %s124 = ssub.s32 256, 256
      %125 = vsyncadd [#allocation4], %s124
      %s126 = sshll.u32 [#allocation7], 4
      %s127 = int_to_ptr.vmem [resolvable:$true] %s126
      %132 = dma.vmem_to_hbm [thread:$0]  %s127, 256, %s3, [#allocation4], 128, 128, 8
    $region25: #{residual_wrapper_forward.1} parent=1 // pred_fallthru
      _
    // Predicated region
    $region26: #{residual_wrapper_forward.1} parent=1 // pred_check
      _
    $region27: #{residual_wrapper_forward.1} parent=1 // pred_check_branch
      %134 = sbr.rel (0) target = $region29
    $region28: #{residual_wrapper_forward.1} parent=1 // pred_region
      %135 = dma.done [#allocation4], 256
    $region29: #{residual_wrapper_forward.1} parent=1 // pred_fallthru
      _
    %136 = vsyncpa [#allocation3], 1
    %137 = vsyncpa [#allocation6], 1
    %138 = vsyncpa [#allocation4], 1

</llo_original>
